<compile_context>
chip_gen: v5e
topology: v5e:2x2
jax: 0.10.0
libtpu: 0.0.40
codegen_flags: <defaults>
</compile_context>

<pallas_src>
import functools
import math

import jax
import jax.numpy as jnp
from jax import lax
from jax.experimental import pallas as pl
from jax.experimental.pallas import tpu as pltpu


# ----------------------------------------------------------------------------
# helpers
# ----------------------------------------------------------------------------
def _round_up(x, m):
    return ((x + m - 1) // m) * m


def _pick_time_chunk(T, max_chunk=16):
    """Largest divisor of T that is <= max_chunk (timesteps per grid step)."""
    tt = 1
    for cand in range(1, min(T, max_chunk) + 1):
        if T % cand == 0:
            tt = cand
    return tt


def _pad_gate_cols(w_t, H, H_pad):
    """(Din, 4H) -> (Din, 4H_pad): gate k's columns land at [k*H_pad, k*H_pad+H)."""
    Din = w_t.shape[0]
    out = jnp.zeros((Din, 4 * H_pad), w_t.dtype)
    for k in range(4):
        out = out.at[:, k * H_pad:k * H_pad + H].set(w_t[:, k * H:(k + 1) * H])
    return out


# ----------------------------------------------------------------------------
# Kernel 1: hoisted input projection  XW = x @ W_ih^T + (b_ih + b_hh)
# One MXU matmul over all (T*B) rows instead of T tiny per-step matmuls.
# ----------------------------------------------------------------------------
def _xw_bias_kernel(x_ref, w_ref, b_ref, out_ref):
    x_bf16 = x_ref[...].astype(jnp.bfloat16)
    out_ref[...] = (jnp.dot(x_bf16, w_ref[...], preferred_element_type=jnp.float32)
                    + b_ref[...])


# ----------------------------------------------------------------------------
# Kernel 2: the recurrence. Grid = (T//TT,), TT steps per grid iteration.
# Gate ordering matches PyTorch nn.LSTM: [i, f, g, o], each gate occupies a
# full 128-lane-aligned block of width H_pad.
# ----------------------------------------------------------------------------
def _lstm_recurrent_kernel(xw_ref, whh_ref, hseq_ref, h_sc, c_sc, *,
                           tt, h_pad, reverse):
    c = pl.program_id(0)

    @pl.when(c == 0)
    def _():
        h_sc[...] = jnp.zeros_like(h_sc)
        c_sc[...] = jnp.zeros_like(c_sc)

    w_hh = whh_ref[...]                 # (H_pad, 4*H_pad) bf16, resident across grid

    def step(s, carry):
        h, cc = carry
        local_t = (tt - 1 - s) if reverse else s
        gates = xw_ref[local_t] + jnp.dot(
            h.astype(jnp.bfloat16), w_hh, preferred_element_type=jnp.float32)

        i_g = jax.nn.sigmoid(gates[:, 0 * h_pad:1 * h_pad])
        f_g = jax.nn.sigmoid(gates[:, 1 * h_pad:2 * h_pad])
        g_g = jnp.tanh(gates[:, 2 * h_pad:3 * h_pad])
        o_g = jax.nn.sigmoid(gates[:, 3 * h_pad:4 * h_pad])

        cc = f_g * cc + i_g * g_g
        h = o_g * jnp.tanh(cc)
        hseq_ref[local_t] = h           # lane-dense (B_pad, H_pad) store
        return h, cc

    h, cc = lax.fori_loop(0, tt, step, (h_sc[...], c_sc[...]), unroll=True)
    h_sc[...] = h
    c_sc[...] = cc


def lstm_layer(x_tbd, w_ih, w_hh, b_ih, b_hh, H, H_pad, reverse):
    """One direction of one LSTM layer.

    x_tbd : (T, B_pad, Din) time-major float32 (batch already padded to mult of 8)
    w_ih  : (4H, Din), w_hh : (4H, H), b_ih/b_hh : (4H,)   (PyTorch layout)
    returns h_seq : (T, B_pad, H_pad) float32, real data in [..., :H]
    """
    T, Bp, Din = x_tbd.shape
    TT = _pick_time_chunk(T)
    nc = T // TT

    # ---- gate-padded, transposed weights (bf16 for MXU) and fused bias -------
    wih_t = _pad_gate_cols(jnp.asarray(w_ih, jnp.float32).T, H, H_pad)
    wih_t = wih_t.astype(jnp.bfloat16)                         # (Din, 4*H_pad)
    whh_t = jnp.zeros((H_pad, 4 * H_pad), jnp.float32)
    whh_t = whh_t.at[:H, :].set(
        _pad_gate_cols(jnp.asarray(w_hh, jnp.float32).T, H, H_pad))
    whh_t = whh_t.astype(jnp.bfloat16)                         # (H_pad, 4*H_pad)
    b_sum = (b_ih + b_hh).astype(jnp.float32)
    bias = jnp.zeros((1, 4 * H_pad), jnp.float32)
    for k in range(4):
        bias = bias.at[0, k * H_pad:k * H_pad + H].set(b_sum[k * H:(k + 1) * H])

    # ---- hoisted input projection (one big matmul, bias folded in) -----------
    rows = T * Bp
    rows_blk = TT * Bp
    x2d = x_tbd.reshape(rows, Din)
    xw = pl.pallas_call(
        _xw_bias_kernel,
        out_shape=jax.ShapeDtypeStruct((rows, 4 * H_pad), jnp.float32),
        grid_spec=pltpu.PrefetchScalarGridSpec(
            num_scalar_prefetch=0,
            grid=(nc,),
            in_specs=[
                pl.BlockSpec((rows_blk, Din), lambda i: (i, 0)),
                pl.BlockSpec((Din, 4 * H_pad), lambda i: (0, 0)),
                pl.BlockSpec((1, 4 * H_pad), lambda i: (0, 0)),
            ],
            out_specs=pl.BlockSpec((rows_blk, 4 * H_pad), lambda i: (i, 0)),
        ),
        compiler_params=pltpu.CompilerParams(
            dimension_semantics=("parallel",)),
    )(x2d, wih_t, bias)
    xw = xw.reshape(T, Bp, 4 * H_pad)

    # ---- recurrence over time chunks; reversal handled via index_map ---------
    if reverse:
        def time_map(c):
            return (nc - 1 - c, 0, 0)
    else:
        def time_map(c):
            return (c, 0, 0)

    kernel = functools.partial(_lstm_recurrent_kernel,
                               tt=TT, h_pad=H_pad, reverse=reverse)
    # TODO(synk): on v7x the two directions of a bidirectional layer could run on the
    # two TensorCores concurrently (leading "parallel" direction axis / pl.core_map).
    h_seq = pl.pallas_call(
        kernel,
        out_shape=jax.ShapeDtypeStruct((T, Bp, H_pad), jnp.float32),
        grid_spec=pltpu.PrefetchScalarGridSpec(
            num_scalar_prefetch=0,
            grid=(nc,),
            in_specs=[
                pl.BlockSpec((TT, Bp, 4 * H_pad), time_map),
                pl.BlockSpec((H_pad, 4 * H_pad), lambda c: (0, 0)),
            ],
            out_specs=pl.BlockSpec((TT, Bp, H_pad), time_map),
            scratch_shapes=[pltpu.VMEM((Bp, H_pad), jnp.float32),
                            pltpu.VMEM((Bp, H_pad), jnp.float32)],
        ),
        compiler_params=pltpu.CompilerParams(
            dimension_semantics=("arbitrary",)),  # recurrence -> sequential grid
    )(xw, whh_t)
    return h_seq


# ----------------------------------------------------------------------------
# Parameter init (PyTorch nn.LSTM / nn.Linear default: U(-1/sqrt(H), 1/sqrt(H)))
# ----------------------------------------------------------------------------
def init_params(key, num_layers, in_dim, hidden_dim, out_dim, bidirectional):
    num_dirs = 2 if bidirectional else 1
    k = 1.0 / math.sqrt(hidden_dim)
    params = {"lstm": {}, "fc": None}
    for layer in range(num_layers):
        layer_in = in_dim if layer == 0 else hidden_dim * num_dirs
        for d in range(num_dirs):
            key, k1, k2, k3, k4 = jax.random.split(key, 5)
            params["lstm"][(layer, d)] = (
                jax.random.uniform(k1, (4 * hidden_dim, layer_in), jnp.float32, -k, k),
                jax.random.uniform(k2, (4 * hidden_dim, hidden_dim), jnp.float32, -k, k),
                jax.random.uniform(k3, (4 * hidden_dim,), jnp.float32, -k, k),
                jax.random.uniform(k4, (4 * hidden_dim,), jnp.float32, -k, k),
            )
    fc_dim = hidden_dim * num_dirs
    kf = 1.0 / math.sqrt(fc_dim)
    key, k1, k2 = jax.random.split(key, 3)
    params["fc"] = (
        jax.random.uniform(k1, (out_dim, fc_dim), jnp.float32, -kf, kf),
        jax.random.uniform(k2, (out_dim,), jnp.float32, -kf, kf),
    )
    return params


# ----------------------------------------------------------------------------
# Full forward (= PyTorch LSTM.forward, eval mode)
# ----------------------------------------------------------------------------
def lstm_model_forward(params, inputs, num_layers, hidden_dim, bidirectional):
    """inputs: (B, T, in_dim) batch-first, like the PyTorch module."""
    B, T, _ = inputs.shape
    Bp = _round_up(B, 8)                                   # fill sublanes
    H = hidden_dim
    H_pad = _round_up(H, 128)                              # fill 128-lane vregs
    num_dirs = 2 if bidirectional else 1

    x = jnp.transpose(inputs.astype(jnp.float32), (1, 0, 2))   # -> (T, B, D)
    if Bp != B:
        x = jnp.pad(x, ((0, 0), (0, Bp - B), (0, 0)))

    for layer in range(num_layers):
        dir_outs = []
        for d in range(num_dirs):
            w_ih, w_hh, b_ih, b_hh = params["lstm"][(layer, d)]
            h_seq = lstm_layer(x, w_ih, w_hh, b_ih, b_hh, H, H_pad,
                               reverse=(d == 1))
            dir_outs.append(h_seq[..., :H])                # drop lane padding
        x = dir_outs[0] if num_dirs == 1 else jnp.concatenate(dir_outs, axis=-1)
        # TODO(synk): inter-layer dropout is training-mode only in PyTorch; not applied.

    # TODO(synk): for the top layer only the t = T-1 hidden state is needed; skipping
    # the full hseq HBM writeback for that layer is a further (minor) optimization.
    h_last = x[-1, :B, :]                                  # == lstm_out[:, -1, :]
    w_fc, b_fc = params["fc"]
    # fc + sigmoid: (B, fc_dim) x (fc_dim, out_dim) is too small for its own kernel.
    logits = h_last @ jnp.asarray(w_fc, jnp.float32).T + jnp.asarray(b_fc, jnp.float32)
    return jax.nn.sigmoid(logits)                          # (B, out_dim) in (0, 1)


if __name__ == "__main__":
    # Module hyperparameters (small, consistent with the module's constructor).
    NUM_LAYERS = 1
    IN_DIM = 16
    HIDDEN_DIM = 32
    OUT_DIM = 8
    BIDIRECTIONAL = False

    # Example input: batch=2, seq=8, feature=in_dim (batch_first=True).
    B, T = 2, 8
    key = jax.random.PRNGKey(0)
    key, k_in = jax.random.split(key)
    inputs = jax.random.normal(k_in, (B, T, IN_DIM), dtype=jnp.float32)

    params = init_params(key, NUM_LAYERS, IN_DIM, HIDDEN_DIM, OUT_DIM, BIDIRECTIONAL)
    out = lstm_model_forward(params, inputs, NUM_LAYERS, HIDDEN_DIM, BIDIRECTIONAL)
    out = jax.block_until_ready(out)
    assert out.shape == (B, OUT_DIM)
    assert bool(jnp.all((out > 0.0) & (out < 1.0)))        # sigmoid range sanity check

    # Also exercise the stacked + bidirectional path (reverse via index_map).
    params_bi = init_params(key, 2, IN_DIM, HIDDEN_DIM, OUT_DIM, True)
    out_bi = lstm_model_forward(params_bi, inputs, 2, HIDDEN_DIM, True)
    out_bi = jax.block_until_ready(out_bi)
    assert out_bi.shape == (B, OUT_DIM)
    assert bool(jnp.all((out_bi > 0.0) & (out_bi < 1.0)))

    print("KERNEL_OK")
</pallas_src>

<mosaic_0001>
module attributes {stable_mosaic.version = 11 : i64} {
  func.func @_xw_bias_kernel(%arg0: i32, %arg1: memref<64x16xf32, #tpu.memory_space<vmem>>, %arg2: memref<16x512xbf16, #tpu.memory_space<vmem>>, %arg3: memref<1x512xf32, #tpu.memory_space<vmem>>, %arg4: memref<64x512xf32, #tpu.memory_space<vmem>>) attributes {dimension_semantics = [#tpu.dimension_semantics<parallel>], iteration_bounds = array<i64: 1>, scalar_prefetch = 0 : i64, scratch_operands = 0 : i64, tpu.core_type = #tpu.core_type<tc>, window_params = [{transform_indices = @transform_0, window_bounds = array<i64: 64, 16>}, {pipeline_mode = #tpu.pipeline_mode<synchronous>, transform_indices = @transform_1, window_bounds = array<i64: 16, 512>}, {pipeline_mode = #tpu.pipeline_mode<synchronous>, transform_indices = @transform_2, window_bounds = array<i64: 1, 512>}, {transform_indices = @transform_3, window_bounds = array<i64: 64, 512>}]} {
    %c0 = arith.constant 0 : index
    %c0_0 = arith.constant 0 : index
    %0 = vector.load %arg1[%c0, %c0_0] : memref<64x16xf32, #tpu.memory_space<vmem>>, vector<64x16xf32>
    %1 = arith.truncf %0 : vector<64x16xf32> to vector<64x16xbf16>
    %c0_1 = arith.constant 0 : index
    %c0_2 = arith.constant 0 : index
    %2 = vector.load %arg2[%c0_1, %c0_2] : memref<16x512xbf16, #tpu.memory_space<vmem>>, vector<16x512xbf16>
    %cst = arith.constant dense<0.000000e+00> : vector<64x512xf32>
    %3 = tpu.matmul %1, %2, %cst {dimension_numbers = #tpu.dot_dimension_numbers<[1], [0], [0], [1], [0, 0, 1, 1], [], []>} : vector<64x16xbf16>, vector<16x512xbf16>, vector<64x512xf32> -> vector<64x512xf32>
    %c0_3 = arith.constant 0 : index
    %c0_4 = arith.constant 0 : index
    %4 = vector.load %arg3[%c0_3, %c0_4] : memref<1x512xf32, #tpu.memory_space<vmem>>, vector<1x512xf32>
    %5 = vector.broadcast %4 : vector<1x512xf32> to vector<64x512xf32>
    %6 = arith.addf %3, %5 : vector<64x512xf32>
    %c0_5 = arith.constant 0 : index
    %c0_6 = arith.constant 0 : index
    %7 = vector.load %arg4[%c0_5, %c0_6] : memref<64x512xf32, #tpu.memory_space<vmem>>, vector<64x512xf32>
    tpu.vector_store %arg4[%c0_5, %c0_6], %6 {strides = array<i32>} : memref<64x512xf32, #tpu.memory_space<vmem>>, vector<64x512xf32>,
    return
  }
  func.func @transform_0(%arg0: i32) -> (i32, i32) {
    %c0_i32 = arith.constant 0 : i32
    %c0_i32_0 = arith.constant 0 : i32
    return %arg0, %c0_i32 : i32, i32
  }
  func.func @transform_1(%arg0: i32) -> (i32, i32) {
    %c0_i32 = arith.constant 0 : i32
    %c0_i32_0 = arith.constant 0 : i32
    %c0_i32_1 = arith.constant 0 : i32
    return %c0_i32, %c0_i32_0 : i32, i32
  }
  func.func @transform_2(%arg0: i32) -> (i32, i32) {
    %c0_i32 = arith.constant 0 : i32
    %c0_i32_0 = arith.constant 0 : i32
    %c0_i32_1 = arith.constant 0 : i32
    return %c0_i32, %c0_i32_0 : i32, i32
  }
  func.func @transform_3(%arg0: i32) -> (i32, i32) {
    %c0_i32 = arith.constant 0 : i32
    %c0_i32_0 = arith.constant 0 : i32
    return %arg0, %c0_i32 : i32, i32
  }
}

</mosaic_0001>

<llo_original>
// kernel: tpu_custom_call.1
$region0: #{tpu_custom_call.1}
  #allocation0 [shape = 'u32[]', space=smem, size = 0x4, offset = 0x4, fixed_abs, tag = 'smem constant byte address 0x4 - core index']
  #allocation1 [shape = 'u32[72,128]{1,0:T(1,128)}', space=vmem, size = 0x9000, scoped, tag = 'internal scratch']
  %s0 = inlined_call_operand.vmem [shape: f32[64,16], index: 0, kind: input, shape index: {}]
  %s1 = inlined_call_operand.vmem [shape: bf16[16,512], index: 1, kind: input, shape index: {}]
  %s2 = inlined_call_operand.vmem [shape: f32[1,512], index: 2, kind: input, shape index: {}]
  %s3 = inlined_call_operand.hbm [shape: f32[64,512], index: 3, kind: output, shape index: {}]
  %s4 = sld [smem:[#allocation0]]
  $region22: #{tpu_custom_call.1} parent=0
    _
  %s6 = ssub.s32 1, %s4
  %s7 = scalar_select 0, %s6, %s4
  $region1: #{tpu_custom_call.1} parent=0
    #allocation2 [shape = 'u8[131072]{0}', space=vmem, size = 0x20000, scoped, tag = 'output window, operand 0, single buffered']
    #allocation3 [shape = 's32[1]{0}', space=sflag, size = 0x4, scoped, tag = 'scoped memory for tpu_custom_call.1']
    %8 = vsyncpa [#allocation3], 0
    // Predicated region
    $region2: #{tpu_custom_call.1} parent=1 // pred_check
      _
    $region3: #{tpu_custom_call.1} parent=1 // pred_check_branch
      %10 = sbr.rel (0) target = $region5
    $region4: #{tpu_custom_call.1} parent=1 // pred_region
      _
    $region5: #{tpu_custom_call.1} parent=1 // pred_fallthru
      _
    // Predicated region
    $region6: #{tpu_custom_call.1} parent=1 // pred_check
      _
    $region7: #{tpu_custom_call.1} parent=1 // pred_check_branch
      %12 = sbr.rel (0) target = $region9
    $region8: #{tpu_custom_call.1} parent=1 // pred_region
      _
    $region9: #{tpu_custom_call.1} parent=1 // pred_fallthru
      _
    // Predicated region
    $region10: #{tpu_custom_call.1} parent=1 // pred_check
      _
    $region11: #{tpu_custom_call.1} parent=1 // pred_check_branch
      %14 = sbr.rel (0) target = $region13
    $region12: #{tpu_custom_call.1} parent=1 // pred_region
      _
    $region13: #{tpu_custom_call.1} parent=1 // pred_fallthru
      _
    %v16 = vld [vmem:[%s0] sm:$0xff]
    %v17 = vld [vmem:[%s0 + $0x8] sm:$0xff]
    %v18 = vld [vmem:[%s0 + $0x10] sm:$0xff]
    %v19 = vld [vmem:[%s0 + $0x18] sm:$0xff]
    %v20 = vld [vmem:[%s0 + $0x20] sm:$0xff]
    %v21 = vld [vmem:[%s0 + $0x28] sm:$0xff]
    %v22 = vld [vmem:[%s0 + $0x30] sm:$0xff]
    %v23 = vld [vmem:[%s0 + $0x38] sm:$0xff]
    %v24 = vpack.c.bf16 %v17, %v16
    %v25 = vpack.c.bf16 %v19, %v18
    %v26 = vpack.c.bf16 %v21, %v20
    %v27 = vpack.c.bf16 %v23, %v22
    %v28 = vld [vmem:[%s1] sm:$0xff]
    %v29 = vld [vmem:[%s1 + $0x8] sm:$0xff]
    %v30 = vld [vmem:[%s1 + $0x10] sm:$0xff]
    %v31 = vld [vmem:[%s1 + $0x18] sm:$0xff]
    %v32 = vld [vmem:[%s2] sm:$0xf]
    %v34 = vperm.slane %v32, 0
    %v35 = vperm.slane %v32, 1
    %v36 = vperm.slane %v32, 2
    %v37 = vperm.slane %v32, 3
    %v46 = vunpack.c.l.b16 %v28
    %v47 = vunpack.c.h.b16 %v28
    %v48 = vunpack.c.l.b16 %v29
    %v49 = vunpack.c.h.b16 %v29
    %v50 = vunpack.c.l.b16 %v30
    %v51 = vunpack.c.h.b16 %v30
    %v52 = vunpack.c.l.b16 %v31
    %v53 = vunpack.c.h.b16 %v31
    %v54 = vpack.c.b16 %v50, %v46
    %v55 = vpack.c.b16 %v51, %v47
    %v56 = vpack.c.b16 %v52, %v48
    %v57 = vpack.c.b16 %v53, %v49
    %vm62 = vcmask 130048
    %v64 = vsel %vm62, %v24, 0
    %v67 = vsel %vm62, %v25, 0
    %v70 = vsel %vm62, %v26, 0
    %v73 = vsel %vm62, %v27, 0
    %75 = vmatpush.bf16.msra.mxu0 0
    %76 = vmatpush.bf16.msra.mxu0 0
    %77 = vmatpush.bf16.msra.mxu0 0
    %78 = vmatpush.bf16.msra.mxu0 0
    %79 = vmatpush.bf16.msra.mxu0 0
    %80 = vmatpush.bf16.msra.mxu0 0
    %81 = vmatpush.bf16.msra.mxu0 0
    %82 = vmatpush.bf16.msra.mxu0 %v54
    %83 = vmatmul.bf16.gmra.mxu0 %v64
    %v84 = vpop.f32.mrf.mxu0
    %v85 = vadd.f32 %v34, %v84
    %v86 = vpop.f32.mrf.mxu0
    %v87 = vadd.f32 %v34, %v86
    %88 = vmatmul.bf16.gmra.mxu0 %v67
    %v89 = vpop.f32.mrf.mxu0
    %v90 = vadd.f32 %v34, %v89
    %v91 = vpop.f32.mrf.mxu0
    %v92 = vadd.f32 %v34, %v91
    %93 = vmatmul.bf16.gmra.mxu0 %v70
    %v94 = vpop.f32.mrf.mxu0
    %v95 = vadd.f32 %v34, %v94
    %v96 = vpop.f32.mrf.mxu0
    %v97 = vadd.f32 %v34, %v96
    %98 = vmatmul.bf16.gmra.mxu0 %v73
    %v99 = vpop.f32.mrf.mxu0
    %v100 = vadd.f32 %v34, %v99
    %v101 = vpop.f32.mrf.mxu0
    %v102 = vadd.f32 %v34, %v101
    %103 = vdwg.mxu0
    %104 = vmatpush.bf16.msra.mxu0 0
    %105 = vmatpush.bf16.msra.mxu0 0
    %106 = vmatpush.bf16.msra.mxu0 0
    %107 = vmatpush.bf16.msra.mxu0 0
    %108 = vmatpush.bf16.msra.mxu0 0
    %109 = vmatpush.bf16.msra.mxu0 0
    %110 = vmatpush.bf16.msra.mxu0 0
    %111 = vmatpush.bf16.msra.mxu0 %v55
    %112 = vmatmul.bf16.gmra.mxu0 %v64
    %v113 = vpop.f32.mrf.mxu0
    %v114 = vadd.f32 %v35, %v113
    %v115 = vpop.f32.mrf.mxu0
    %v116 = vadd.f32 %v35, %v115
    %117 = vmatmul.bf16.gmra.mxu0 %v67
    %v118 = vpop.f32.mrf.mxu0
    %v119 = vadd.f32 %v35, %v118
    %v120 = vpop.f32.mrf.mxu0
    %v121 = vadd.f32 %v35, %v120
    %122 = vmatmul.bf16.gmra.mxu0 %v70
    %v123 = vpop.f32.mrf.mxu0
    %v124 = vadd.f32 %v35, %v123
    %v125 = vpop.f32.mrf.mxu0
    %v126 = vadd.f32 %v35, %v125
    %127 = vmatmul.bf16.gmra.mxu0 %v73
    %v128 = vpop.f32.mrf.mxu0
    %v129 = vadd.f32 %v35, %v128
    %v130 = vpop.f32.mrf.mxu0
    %v131 = vadd.f32 %v35, %v130
    %132 = vdwg.mxu0
    %133 = vmatpush.bf16.msra.mxu0 0
    %134 = vmatpush.bf16.msra.mxu0 0
    %135 = vmatpush.bf16.msra.mxu0 0
    %136 = vmatpush.bf16.msra.mxu0 0
    %137 = vmatpush.bf16.msra.mxu0 0
    %138 = vmatpush.bf16.msra.mxu0 0
    %139 = vmatpush.bf16.msra.mxu0 0
    %140 = vmatpush.bf16.msra.mxu0 %v56
    %141 = vmatmul.bf16.gmra.mxu0 %v64
    %v142 = vpop.f32.mrf.mxu0
    %v143 = vadd.f32 %v36, %v142
    %v144 = vpop.f32.mrf.mxu0
    %v145 = vadd.f32 %v36, %v144
    %146 = vmatmul.bf16.gmra.mxu0 %v67
    %v147 = vpop.f32.mrf.mxu0
    %v148 = vadd.f32 %v36, %v147
    %v149 = vpop.f32.mrf.mxu0
    %v150 = vadd.f32 %v36, %v149
    %151 = vmatmul.bf16.gmra.mxu0 %v70
    %v152 = vpop.f32.mrf.mxu0
    %v153 = vadd.f32 %v36, %v152
    %v154 = vpop.f32.mrf.mxu0
    %v155 = vadd.f32 %v36, %v154
    %156 = vmatmul.bf16.gmra.mxu0 %v73
    %v157 = vpop.f32.mrf.mxu0
    %v158 = vadd.f32 %v36, %v157
    %v159 = vpop.f32.mrf.mxu0
    %v160 = vadd.f32 %v36, %v159
    %161 = vdwg.mxu0
    %162 = vmatpush.bf16.msra.mxu0 0
    %163 = vmatpush.bf16.msra.mxu0 0
    %164 = vmatpush.bf16.msra.mxu0 0
    %165 = vmatpush.bf16.msra.mxu0 0
    %166 = vmatpush.bf16.msra.mxu0 0
    %167 = vmatpush.bf16.msra.mxu0 0
    %168 = vmatpush.bf16.msra.mxu0 0
    %169 = vmatpush.bf16.msra.mxu0 %v57
    %170 = vmatmul.bf16.gmra.mxu0 %v64
    %v171 = vpop.f32.mrf.mxu0
    %v172 = vadd.f32 %v37, %v171
    %v173 = vpop.f32.mrf.mxu0
    %v174 = vadd.f32 %v37, %v173
    %175 = vmatmul.bf16.gmra.mxu0 %v67
    %v176 = vpop.f32.mrf.mxu0
    %v177 = vadd.f32 %v37, %v176
    %v178 = vpop.f32.mrf.mxu0
    %v179 = vadd.f32 %v37, %v178
    %180 = vmatmul.bf16.gmra.mxu0 %v70
    %v181 = vpop.f32.mrf.mxu0
    %v182 = vadd.f32 %v37, %v181
    %v183 = vpop.f32.mrf.mxu0
    %v184 = vadd.f32 %v37, %v183
    %185 = vmatmul.bf16.gmra.mxu0 %v73
    %v186 = vpop.f32.mrf.mxu0
    %v187 = vadd.f32 %v37, %v186
    %v188 = vpop.f32.mrf.mxu0
    %v189 = vadd.f32 %v37, %v188
    %190 = vdwg.mxu0
    %191 = vst [vmem:[#allocation2] sm:$0xff] %v85
    %192 = vst [vmem:[#allocation2 + $0x8] sm:$0xff] %v114
    %193 = vst [vmem:[#allocation2 + $0x10] sm:$0xff] %v143
    %194 = vst [vmem:[#allocation2 + $0x18] sm:$0xff] %v172
    %195 = vst [vmem:[#allocation2 + $0x20] sm:$0xff] %v87
    %196 = vst [vmem:[#allocation2 + $0x28] sm:$0xff] %v116
    %197 = vst [vmem:[#allocation2 + $0x30] sm:$0xff] %v145
    %198 = vst [vmem:[#allocation2 + $0x38] sm:$0xff] %v174
    %199 = vst [vmem:[#allocation2 + $0x40] sm:$0xff] %v90
    %200 = vst [vmem:[#allocation2 + $0x48] sm:$0xff] %v119
    %201 = vst [vmem:[#allocation2 + $0x50] sm:$0xff] %v148
    %202 = vst [vmem:[#allocation2 + $0x58] sm:$0xff] %v177
    %203 = vst [vmem:[#allocation2 + $0x60] sm:$0xff] %v92
    %204 = vst [vmem:[#allocation2 + $0x68] sm:$0xff] %v121
    %205 = vst [vmem:[#allocation2 + $0x70] sm:$0xff] %v150
    %206 = vst [vmem:[#allocation2 + $0x78] sm:$0xff] %v179
    %207 = vst [vmem:[#allocation2 + $0x80] sm:$0xff] %v95
    %208 = vst [vmem:[#allocation2 + $0x88] sm:$0xff] %v124
    %209 = vst [vmem:[#allocation2 + $0x90] sm:$0xff] %v153
    %210 = vst [vmem:[#allocation2 + $0x98] sm:$0xff] %v182
    %211 = vst [vmem:[#allocation2 + $0xa0] sm:$0xff] %v97
    %212 = vst [vmem:[#allocation2 + $0xa8] sm:$0xff] %v126
    %213 = vst [vmem:[#allocation2 + $0xb0] sm:$0xff] %v155
    %214 = vst [vmem:[#allocation2 + $0xb8] sm:$0xff] %v184
    %215 = vst [vmem:[#allocation2 + $0xc0] sm:$0xff] %v100
    %216 = vst [vmem:[#allocation2 + $0xc8] sm:$0xff] %v129
    %217 = vst [vmem:[#allocation2 + $0xd0] sm:$0xff] %v158
    %218 = vst [vmem:[#allocation2 + $0xd8] sm:$0xff] %v187
    %219 = vst [vmem:[#allocation2 + $0xe0] sm:$0xff] %v102
    %220 = vst [vmem:[#allocation2 + $0xe8] sm:$0xff] %v131
    %221 = vst [vmem:[#allocation2 + $0xf0] sm:$0xff] %v160
    %222 = vst [vmem:[#allocation2 + $0xf8] sm:$0xff] %v189
    // Predicated region
    $region14: #{tpu_custom_call.1} parent=1 // pred_check
      _
    $region15: #{tpu_custom_call.1} parent=1 // pred_check_branch
      %224 = sbr.rel (0) target = $region17
    $region16: #{tpu_custom_call.1} parent=1 // pred_region
      %226 = vsyncadd [#allocation3], 0
      %s227 = sshll.u32 [#allocation2], 4
      %s228 = int_to_ptr.vmem [resolvable:$true] %s227
      %s229 = sshll.u32 %s3, 4
      %s230 = int_to_ptr.hbm [resolvable:$true] %s229
      %235 = dma.vmem_to_hbm [thread:$0]  %s228, 4096, %s230, [#allocation3], 512, 512, 32
    $region17: #{tpu_custom_call.1} parent=1 // pred_fallthru
      _
    // Predicated region
    $region18: #{tpu_custom_call.1} parent=1 // pred_check
      _
    $region19: #{tpu_custom_call.1} parent=1 // pred_check_branch
      %237 = sbr.rel (0) target = $region21
    $region20: #{tpu_custom_call.1} parent=1 // pred_region
      %239 = dma.done [#allocation3], 4096
    $region21: #{tpu_custom_call.1} parent=1 // pred_fallthru
      _
    %240 = vsyncpa [#allocation3], 1

</llo_original>
